<compile_context>
chip_gen: v5e
topology: v5e:2x2
jax: 0.10.0
libtpu: 0.0.40
codegen_flags: <defaults>
</compile_context>

<pallas_src>
import math

import jax
import jax.numpy as jnp
import numpy as np
from jax.experimental import pallas as pl
from jax.experimental.pallas import tpu as pltpu

EMBED_DIM = 32
NUM_HEADS = 4
HEAD_DIM = EMBED_DIM // NUM_HEADS
FC_OUT = 512

BASE_TILE_N = 2048          # default row tile
BIG_TILE_N = 4096           # used only when N is large enough to keep many steps
SMALL_N_XLA_THRESHOLD = 512  # below this, plain XLA beats kernel launch overhead


def _fused_kernel(x_ref, w_ref, b_ref, o_ref):
    """y = x @ W + b   where W = Wv^T Wo^T Wfc^T and b folds all biases (seq_len==1 MHA)."""
    o_ref[...] = (
        jnp.dot(x_ref[...], w_ref[...], preferred_element_type=jnp.float32)
        + b_ref[...]
    )


def _round_up_8(v):
    return ((v + 7) // 8) * 8


def _pick_tile_n(n):
    """Row tile: big enough to amortize step overhead, >=2 grid steps when possible."""
    max_tile = BIG_TILE_N if n >= 4 * BIG_TILE_N else BASE_TILE_N
    if n <= 2 * max_tile:
        # Guarantee >= 2 (near-)balanced grid steps so v7x's two TensorCores
        # both share the HBM-write bandwidth on the "parallel" axis.
        tile = _round_up_8(pl.cdiv(n, 2))
    else:
        tile = max_tile
    return max(8, min(tile, max_tile))


def _fold_params(params):
    (wq_t, bq, wk_t, bk, wv_t, bv, wo_t, bo, wfc_t, bfc) = params
    # seq_len == 1  =>  softmax == 1  =>  attn == V, so Q/K/bq/bk are dead.
    w_fold = wv_t @ wo_t @ wfc_t                 # (E, 512)
    b_fold = (bv @ wo_t + bo) @ wfc_t + bfc      # (1, 512)
    return w_fold, b_fold


def self_attention_fusion(x, params, *, tile_n=None, use_pallas=None):
    """x: (N, E) float32.  Returns (N, 512) float32."""
    n, e = x.shape
    assert e == EMBED_DIM

    w_fold, b_fold = _fold_params(params)

    if use_pallas is None:
        use_pallas = n >= SMALL_N_XLA_THRESHOLD
    if not use_pallas:
        # Tiny N: a single XLA GEMM is as fast or faster than paying kernel launch cost.
        return x @ w_fold + b_fold

    if tile_n is None:
        tile_n = _pick_tile_n(n)
    assert tile_n % 8 == 0, "tile_n must be a multiple of 8 (sublane rule)"

    grid_steps = pl.cdiv(n, tile_n)
    n_pad = grid_steps * tile_n
    if n_pad != n:
        # Pad rows so every block is full-size; extra rows compute garbage and are sliced off.
        x = jnp.pad(x, ((0, n_pad - n), (0, 0)))

    cost = pl.CostEstimate(
        flops=2 * n_pad * EMBED_DIM * FC_OUT,
        transcendentals=0,
        bytes_accessed=(n_pad * EMBED_DIM + EMBED_DIM * FC_OUT + FC_OUT + n_pad * FC_OUT) * 4,
    )

    cp_kwargs = dict(dimension_semantics=("parallel",))
    if tile_n > BASE_TILE_N:
        # tile_n=4096 needs ~17.3 MiB of double-buffered blocks, beyond v5e's 16 MiB
        # default scoped VMEM (v6e/v7x defaults are fine; 28 MiB is under every physical cap).
        cp_kwargs["vmem_limit_bytes"] = 28 << 20

    out = pl.pallas_call(
        _fused_kernel,
        out_shape=jax.ShapeDtypeStruct((n_pad, FC_OUT), jnp.float32),
        grid=(grid_steps,),
        in_specs=[
            pl.BlockSpec((tile_n, EMBED_DIM), lambda i: (i, 0)),      # x tile (streamed)
            pl.BlockSpec((EMBED_DIM, FC_OUT), lambda i: (0, 0)),      # folded weight (resident)
            pl.BlockSpec((1, FC_OUT), lambda i: (0, 0)),              # folded bias   (resident)
        ],
        out_specs=pl.BlockSpec((tile_n, FC_OUT), lambda i: (i, 0)),   # lane-dense 512-wide stores
        compiler_params=pltpu.CompilerParams(**cp_kwargs),
        cost_estimate=cost,
    )(x, w_fold, b_fold)

    return out[:n] if n_pad != n else out


def make_params(key):
    """Deterministic synthetic parameters matching nn.MultiheadAttention + Linear shapes."""
    ks = jax.random.split(key, 10)
    scale = 0.05

    def w(k, shape):
        return jax.random.normal(k, shape, jnp.float32) * scale

    # PyTorch stores weights as (out, in); we pass them transposed to (in, out).
    wq_t = w(ks[0], (EMBED_DIM, EMBED_DIM))
    wk_t = w(ks[1], (EMBED_DIM, EMBED_DIM))
    wv_t = w(ks[2], (EMBED_DIM, EMBED_DIM))
    wo_t = w(ks[3], (EMBED_DIM, EMBED_DIM))
    wfc_t = w(ks[4], (EMBED_DIM, FC_OUT))
    bq = w(ks[5], (1, EMBED_DIM))
    bk = w(ks[6], (1, EMBED_DIM))
    bv = w(ks[7], (1, EMBED_DIM))
    bo = w(ks[8], (1, EMBED_DIM))
    bfc = w(ks[9], (1, FC_OUT))
    return (wq_t, bq, wk_t, bk, wv_t, bv, wo_t, bo, wfc_t, bfc)


def reference_forward(x, params):
    """Pure-JAX reference replicating the PyTorch forward (seq_len = 1 MHA + fc)."""
    (wq_t, bq, wk_t, bk, wv_t, bv, wo_t, bo, wfc_t, bfc) = params
    n = x.shape[0]
    q = x @ wq_t + bq
    k = x @ wk_t + bk
    v = x @ wv_t + bv
    qh = q.reshape(n, NUM_HEADS, HEAD_DIM)
    kh = k.reshape(n, NUM_HEADS, HEAD_DIM)
    vh = v.reshape(n, NUM_HEADS, HEAD_DIM)
    # scores over the single key position, shape (n, H, 1)
    s = (qh * kh).sum(-1, keepdims=True) / math.sqrt(HEAD_DIM)
    wt = jax.nn.softmax(s, axis=-1)      # == 1.0 exactly
    attn = (wt * vh).reshape(n, EMBED_DIM)
    o = attn @ wo_t + bo
    return o @ wfc_t + bfc


if __name__ == "__main__":
    key = jax.random.PRNGKey(0)
    pkey, xkey1, xkey2 = jax.random.split(key, 3)
    params = make_params(pkey)

    # 1) Small smoke test (N=8, single full-extent block) — force the Pallas path so
    #    the kernel itself is exercised even below the XLA-fallback threshold.
    x_small = jax.random.normal(xkey1, (8, EMBED_DIM), jnp.float32)
    out_small = jax.block_until_ready(
        self_attention_fusion(x_small, params, use_pallas=True)
    )
    ref_small = reference_forward(x_small, params)
    assert out_small.shape == (8, FC_OUT)
    np.testing.assert_allclose(
        np.asarray(out_small), np.asarray(ref_small), rtol=1e-4, atol=1e-4
    )

    # 2) Tiled / padded path: N=1000 (not a tile multiple) -> 2 grid steps + row padding.
    x_tiled = jax.random.normal(xkey2, (1000, EMBED_DIM), jnp.float32)
    out_tiled = jax.block_until_ready(self_attention_fusion(x_tiled, params))
    ref_tiled = reference_forward(x_tiled, params)
    assert out_tiled.shape == (1000, FC_OUT)
    # Host-side weight folding re-associates fp32 sums; differences stay at ~1e-6 level.
    np.testing.assert_allclose(
        np.asarray(out_tiled), np.asarray(ref_tiled), rtol=1e-4, atol=1e-4
    )

    print("KERNEL_OK")
</pallas_src>

<mosaic_0001>
module attributes {stable_mosaic.version = 11 : i64} {
  func.func @_fused_kernel(%arg0: i32, %arg1: memref<8x32xf32, #tpu.memory_space<vmem>>, %arg2: memref<32x512xf32, #tpu.memory_space<vmem>>, %arg3: memref<1x512xf32, #tpu.memory_space<vmem>>, %arg4: memref<8x512xf32, #tpu.memory_space<vmem>>) attributes {dimension_semantics = [#tpu.dimension_semantics<parallel>], iteration_bounds = array<i64: 1>, scalar_prefetch = 0 : i64, scratch_operands = 0 : i64, tpu.core_type = #tpu.core_type<tc>, window_params = [{transform_indices = @transform_0, window_bounds = array<i64: 8, 32>}, {pipeline_mode = #tpu.pipeline_mode<synchronous>, transform_indices = @transform_1, window_bounds = array<i64: 32, 512>}, {pipeline_mode = #tpu.pipeline_mode<synchronous>, transform_indices = @transform_2, window_bounds = array<i64: 1, 512>}, {transform_indices = @transform_3, window_bounds = array<i64: 8, 512>}]} {
    %c0 = arith.constant 0 : index
    %c0_0 = arith.constant 0 : index
    %0 = vector.load %arg1[%c0, %c0_0] : memref<8x32xf32, #tpu.memory_space<vmem>>, vector<8x32xf32>
    %c0_1 = arith.constant 0 : index
    %c0_2 = arith.constant 0 : index
    %1 = vector.load %arg2[%c0_1, %c0_2] : memref<32x512xf32, #tpu.memory_space<vmem>>, vector<32x512xf32>
    %cst = arith.constant dense<0.000000e+00> : vector<8x512xf32>
    %2 = tpu.matmul %0, %1, %cst {dimension_numbers = #tpu.dot_dimension_numbers<[1], [0], [0], [1], [0, 0, 1, 1], [], []>} : vector<8x32xf32>, vector<32x512xf32>, vector<8x512xf32> -> vector<8x512xf32>
    %c0_3 = arith.constant 0 : index
    %c0_4 = arith.constant 0 : index
    %3 = vector.load %arg3[%c0_3, %c0_4] : memref<1x512xf32, #tpu.memory_space<vmem>>, vector<1x512xf32>
    %4 = vector.broadcast %3 : vector<1x512xf32> to vector<8x512xf32>
    %5 = arith.addf %2, %4 : vector<8x512xf32>
    %c0_5 = arith.constant 0 : index
    %c0_6 = arith.constant 0 : index
    %6 = vector.load %arg4[%c0_5, %c0_6] : memref<8x512xf32, #tpu.memory_space<vmem>>, vector<8x512xf32>
    tpu.vector_store %arg4[%c0_5, %c0_6], %5 {strides = array<i32>} : memref<8x512xf32, #tpu.memory_space<vmem>>, vector<8x512xf32>,
    return
  }
  func.func @transform_0(%arg0: i32) -> (i32, i32) {
    %c0_i32 = arith.constant 0 : i32
    %c0_i32_0 = arith.constant 0 : i32
    return %arg0, %c0_i32 : i32, i32
  }
  func.func @transform_1(%arg0: i32) -> (i32, i32) {
    %c0_i32 = arith.constant 0 : i32
    %c0_i32_0 = arith.constant 0 : i32
    %c0_i32_1 = arith.constant 0 : i32
    return %c0_i32, %c0_i32_0 : i32, i32
  }
  func.func @transform_2(%arg0: i32) -> (i32, i32) {
    %c0_i32 = arith.constant 0 : i32
    %c0_i32_0 = arith.constant 0 : i32
    %c0_i32_1 = arith.constant 0 : i32
    return %c0_i32, %c0_i32_0 : i32, i32
  }
  func.func @transform_3(%arg0: i32) -> (i32, i32) {
    %c0_i32 = arith.constant 0 : i32
    %c0_i32_0 = arith.constant 0 : i32
    return %arg0, %c0_i32 : i32, i32
  }
}

</mosaic_0001>

<llo_original>
// kernel: tpu_custom_call.1
$region0: #{tpu_custom_call.1}
  #allocation0 [shape = 'u32[]', space=smem, size = 0x4, offset = 0x4, fixed_abs, tag = 'smem constant byte address 0x4 - core index']
  #allocation1 [shape = 'u32[72,128]{1,0:T(1,128)}', space=vmem, size = 0x9000, scoped, tag = 'internal scratch']
  %s0 = inlined_call_operand.hbm [shape: f32[8,32], index: 0, kind: input, shape index: {}]
  %s1 = inlined_call_operand.hbm [shape: f32[32,512], index: 1, kind: input, shape index: {}]
  %s2 = inlined_call_operand.hbm [shape: f32[1,512], index: 2, kind: input, shape index: {}]
  %s3 = inlined_call_operand.hbm [shape: f32[8,512], index: 3, kind: output, shape index: {}]
  %s4 = sld [smem:[#allocation0]]
  $region34: #{tpu_custom_call.1} parent=0
    _
  %s6 = ssub.s32 1, %s4
  %s7 = scalar_select 0, %s6, %s4
  $region1: #{tpu_custom_call.1} parent=0
    #allocation2 [shape = 'u8[4096]{0}', space=vmem, size = 0x1000, scoped, tag = 'input window, operand 0, single buffered']
    #allocation3 [shape = 's32[1]{0}', space=sflag, size = 0x4, scoped, tag = 'scoped memory for tpu_custom_call.1']
    #allocation4 [shape = 's32[1]{0}', space=sflag, size = 0x4, scoped, tag = 'scoped memory for tpu_custom_call.1']
    #allocation5 [shape = 'u8[65536]{0}', space=vmem, size = 0x10000, scoped, tag = 'input window, operand 1, single buffered']
    #allocation6 [shape = 's32[1]{0}', space=sflag, size = 0x4, scoped, tag = 'scoped memory for tpu_custom_call.1']
    #allocation7 [shape = 'u8[2048]{0}', space=vmem, size = 0x800, scoped, tag = 'input window, operand 2, single buffered']
    #allocation8 [shape = 'u8[16384]{0}', space=vmem, size = 0x4000, scoped, tag = 'output window, operand 0, single buffered']
    %8 = vsyncpa [#allocation3], 0
    %9 = vsyncpa [#allocation6], 0
    %10 = vsyncpa [#allocation4], 0
    // Predicated region
    $region2: #{tpu_custom_call.1} parent=1 // pred_check
      _
    $region3: #{tpu_custom_call.1} parent=1 // pred_check_branch
      %12 = sbr.rel (0) target = $region5
    $region4: #{tpu_custom_call.1} parent=1 // pred_region
      %14 = vsyncadd [#allocation3], 0
      %s16 = sshll.u32 %s0, 4
      %s17 = int_to_ptr.hbm [resolvable:$true] %s16
      %s18 = sshll.u32 [#allocation2], 4
      %s19 = int_to_ptr.vmem [resolvable:$true] %s18
      %21 = dma.hbm_to_vmem [thread:$0]  %s17, 128, %s19, [#allocation3]
    $region5: #{tpu_custom_call.1} parent=1 // pred_fallthru
      _
    // Predicated region
    $region6: #{tpu_custom_call.1} parent=1 // pred_check
      _
    $region7: #{tpu_custom_call.1} parent=1 // pred_check_branch
      %23 = sbr.rel (0) target = $region9
    $region8: #{tpu_custom_call.1} parent=1 // pred_region
      %25 = vsyncadd [#allocation6], 0
      %s26 = sshll.u32 %s1, 4
      %s27 = int_to_ptr.hbm [resolvable:$true] %s26
      %s28 = sshll.u32 [#allocation5], 4
      %s29 = int_to_ptr.vmem [resolvable:$true] %s28
      %34 = dma.hbm_to_vmem [thread:$0]  %s27, 2048, %s29, [#allocation6], 512, 512, 32
    $region9: #{tpu_custom_call.1} parent=1 // pred_fallthru
      _
    // Predicated region
    $region10: #{tpu_custom_call.1} parent=1 // pred_check
      _
    $region11: #{tpu_custom_call.1} parent=1 // pred_check_branch
      %36 = sbr.rel (0) target = $region13
    $region12: #{tpu_custom_call.1} parent=1 // pred_region
      %38 = vsyncadd [#allocation6], 0
      %s40 = sshll.u32 %s2, 4
      %s41 = int_to_ptr.hbm [resolvable:$true] %s40
      %s42 = sshll.u32 [#allocation7], 4
      %s43 = int_to_ptr.vmem [resolvable:$true] %s42
      %45 = dma.hbm_to_vmem [thread:$0]  %s41, 64, %s43, [#allocation6]
    $region13: #{tpu_custom_call.1} parent=1 // pred_fallthru
      _
    // Predicated region
    $region14: #{tpu_custom_call.1} parent=1 // pred_check
      _
    $region15: #{tpu_custom_call.1} parent=1 // pred_check_branch
      %47 = sbr.rel (0) target = $region17
    $region16: #{tpu_custom_call.1} parent=1 // pred_region
      %49 = dma.done [#allocation3], 128
    $region17: #{tpu_custom_call.1} parent=1 // pred_fallthru
      _
    // Predicated region
    $region18: #{tpu_custom_call.1} parent=1 // pred_check
      _
    $region19: #{tpu_custom_call.1} parent=1 // pred_check_branch
      %51 = sbr.rel (0) target = $region21
    $region20: #{tpu_custom_call.1} parent=1 // pred_region
      %53 = dma.done [#allocation6], 2048
    $region21: #{tpu_custom_call.1} parent=1 // pred_fallthru
      _
    // Predicated region
    $region22: #{tpu_custom_call.1} parent=1 // pred_check
      _
    $region23: #{tpu_custom_call.1} parent=1 // pred_check_branch
      %55 = sbr.rel (0) target = $region25
    $region24: #{tpu_custom_call.1} parent=1 // pred_region
      %57 = dma.done [#allocation6], 64
    $region25: #{tpu_custom_call.1} parent=1 // pred_fallthru
      _
    %v58 = vld [vmem:[#allocation2] sm:$0xff]
    %v59 = vld [vmem:[#allocation5] sm:$0xff]
    %v60 = vld [vmem:[#allocation5 + $0x8] sm:$0xff]
    %v61 = vld [vmem:[#allocation5 + $0x10] sm:$0xff]
    %v62 = vld [vmem:[#allocation5 + $0x18] sm:$0xff]
    %v63 = vld [vmem:[#allocation5 + $0x20] sm:$0xff]
    %v64 = vld [vmem:[#allocation5 + $0x28] sm:$0xff]
    %v65 = vld [vmem:[#allocation5 + $0x30] sm:$0xff]
    %v66 = vld [vmem:[#allocation5 + $0x38] sm:$0xff]
    %v67 = vld [vmem:[#allocation5 + $0x40] sm:$0xff]
    %v68 = vld [vmem:[#allocation5 + $0x48] sm:$0xff]
    %v69 = vld [vmem:[#allocation5 + $0x50] sm:$0xff]
    %v70 = vld [vmem:[#allocation5 + $0x58] sm:$0xff]
    %v71 = vld [vmem:[#allocation5 + $0x60] sm:$0xff]
    %v72 = vld [vmem:[#allocation5 + $0x68] sm:$0xff]
    %v73 = vld [vmem:[#allocation5 + $0x70] sm:$0xff]
    %v74 = vld [vmem:[#allocation5 + $0x78] sm:$0xff]
    %v75 = vld [vmem:[#allocation7] sm:$0xf]
    %v77 = vperm.slane %v75, 0
    %v78 = vperm.slane %v75, 1
    %v79 = vperm.slane %v75, 2
    %v80 = vperm.slane %v75, 3
    %vm85 = vcmask 261120
    %v87 = vsel %vm85, %v58, 0
    %89 = vmatpush.msra.mxu0 0.0
    %90 = vmatpush.msra.mxu0 0.0
    %91 = vmatpush.msra.mxu0 0.0
    %92 = vmatpush.msra.mxu0 0.0
    %93 = vmatpush.msra.mxu0 0.0
    %94 = vmatpush.msra.mxu0 0.0
    %95 = vmatpush.msra.mxu0 0.0
    %96 = vmatpush.msra.mxu0 0.0
    %97 = vmatpush.msra.mxu0 0.0
    %98 = vmatpush.msra.mxu0 0.0
    %99 = vmatpush.msra.mxu0 0.0
    %100 = vmatpush.msra.mxu0 0.0
    %101 = vmatpush.msra.mxu0 %v71
    %102 = vmatpush.msra.mxu0 %v67
    %103 = vmatpush.msra.mxu0 %v63
    %104 = vmatpush.msra.mxu0 %v59
    %105 = vmatmul.f32.gmra.mxu0 %v87
    %v106 = vpop.f32.mrf.mxu0
    %v107 = vadd.f32 %v77, %v106
    %108 = vdwg.mxu0
    %109 = vmatpush.msra.mxu0 0.0
    %110 = vmatpush.msra.mxu0 0.0
    %111 = vmatpush.msra.mxu0 0.0
    %112 = vmatpush.msra.mxu0 0.0
    %113 = vmatpush.msra.mxu0 0.0
    %114 = vmatpush.msra.mxu0 0.0
    %115 = vmatpush.msra.mxu0 0.0
    %116 = vmatpush.msra.mxu0 0.0
    %117 = vmatpush.msra.mxu0 0.0
    %118 = vmatpush.msra.mxu0 0.0
    %119 = vmatpush.msra.mxu0 0.0
    %120 = vmatpush.msra.mxu0 0.0
    %121 = vmatpush.msra.mxu0 %v72
    %122 = vmatpush.msra.mxu0 %v68
    %123 = vmatpush.msra.mxu0 %v64
    %124 = vmatpush.msra.mxu0 %v60
    %125 = vmatmul.f32.gmra.mxu0 %v87
    %v126 = vpop.f32.mrf.mxu0
    %v127 = vadd.f32 %v78, %v126
    %128 = vdwg.mxu0
    %129 = vmatpush.msra.mxu0 0.0
    %130 = vmatpush.msra.mxu0 0.0
    %131 = vmatpush.msra.mxu0 0.0
    %132 = vmatpush.msra.mxu0 0.0
    %133 = vmatpush.msra.mxu0 0.0
    %134 = vmatpush.msra.mxu0 0.0
    %135 = vmatpush.msra.mxu0 0.0
    %136 = vmatpush.msra.mxu0 0.0
    %137 = vmatpush.msra.mxu0 0.0
    %138 = vmatpush.msra.mxu0 0.0
    %139 = vmatpush.msra.mxu0 0.0
    %140 = vmatpush.msra.mxu0 0.0
    %141 = vmatpush.msra.mxu0 %v73
    %142 = vmatpush.msra.mxu0 %v69
    %143 = vmatpush.msra.mxu0 %v65
    %144 = vmatpush.msra.mxu0 %v61
    %145 = vmatmul.f32.gmra.mxu0 %v87
    %v146 = vpop.f32.mrf.mxu0
    %v147 = vadd.f32 %v79, %v146
    %148 = vdwg.mxu0
    %149 = vmatpush.msra.mxu0 0.0
    %150 = vmatpush.msra.mxu0 0.0
    %151 = vmatpush.msra.mxu0 0.0
    %152 = vmatpush.msra.mxu0 0.0
    %153 = vmatpush.msra.mxu0 0.0
    %154 = vmatpush.msra.mxu0 0.0
    %155 = vmatpush.msra.mxu0 0.0
    %156 = vmatpush.msra.mxu0 0.0
    %157 = vmatpush.msra.mxu0 0.0
    %158 = vmatpush.msra.mxu0 0.0
    %159 = vmatpush.msra.mxu0 0.0
    %160 = vmatpush.msra.mxu0 0.0
    %161 = vmatpush.msra.mxu0 %v74
    %162 = vmatpush.msra.mxu0 %v70
    %163 = vmatpush.msra.mxu0 %v66
    %164 = vmatpush.msra.mxu0 %v62
    %165 = vmatmul.f32.gmra.mxu0 %v87
    %v166 = vpop.f32.mrf.mxu0
    %v167 = vadd.f32 %v80, %v166
    %168 = vdwg.mxu0
    %169 = vst [vmem:[#allocation8] sm:$0xff] %v107
    %170 = vst [vmem:[#allocation8 + $0x8] sm:$0xff] %v127
    %171 = vst [vmem:[#allocation8 + $0x10] sm:$0xff] %v147
    %172 = vst [vmem:[#allocation8 + $0x18] sm:$0xff] %v167
    // Predicated region
    $region26: #{tpu_custom_call.1} parent=1 // pred_check
      _
    $region27: #{tpu_custom_call.1} parent=1 // pred_check_branch
      %174 = sbr.rel (0) target = $region29
    $region28: #{tpu_custom_call.1} parent=1 // pred_region
      %176 = vsyncadd [#allocation4], 0
      %s178 = sshll.u32 [#allocation8], 4
      %s179 = int_to_ptr.vmem [resolvable:$true] %s178
      %s180 = sshll.u32 %s3, 4
      %s181 = int_to_ptr.hbm [resolvable:$true] %s180
      %183 = dma.vmem_to_hbm [thread:$0]  %s179, 512, %s181, [#allocation4]
    $region29: #{tpu_custom_call.1} parent=1 // pred_fallthru
      _
    // Predicated region
    $region30: #{tpu_custom_call.1} parent=1 // pred_check
      _
    $region31: #{tpu_custom_call.1} parent=1 // pred_check_branch
      %185 = sbr.rel (0) target = $region33
    $region32: #{tpu_custom_call.1} parent=1 // pred_region
      %187 = dma.done [#allocation4], 512
    $region33: #{tpu_custom_call.1} parent=1 // pred_fallthru
      _
    %188 = vsyncpa [#allocation3], 1
    %189 = vsyncpa [#allocation6], 1
    %190 = vsyncpa [#allocation4], 1

</llo_original>
